<compile_context>
chip_gen: v6e
topology: v6e:2x2x1
jax: 0.10.0
libtpu: 0.0.40
codegen_flags: <defaults>
</compile_context>

<pallas_src>
from functools import partial

import numpy as np
import jax
import jax.numpy as jnp
from jax.experimental import pallas as pl
from jax.experimental.pallas import tpu as pltpu

MID_DIM = 16
HID = 256  # hidden width of obs_fc1 / goal_fc1


def _round_up(x, m):
    return ((x + m - 1) // m) * m


def make_qnet_kernel(gamma):
    alpha = float(np.log(gamma))                 # self.alpha = np.log(self.gamma)
    inv_one_minus_gamma = 1.0 / (1.0 - gamma)

    def kernel(obs_ref, goal_ref, w1o_ref, b1o_ref, w1g_ref, b1g_ref,
               w2o_ref, b2o_ref, w2g_ref, b2g_ref, sel_ref, out_ref):
        # --- layer 1 (obs / goal branches; inputs pre-cast to matmul dtype) ---
        h1o = jnp.dot(obs_ref[...], w1o_ref[...],
                      preferred_element_type=jnp.float32)
        h1o = jnp.maximum(h1o + b1o_ref[...], 0.0)                 # [TB, 256] f32
        h1g = jnp.dot(goal_ref[...], w1g_ref[...],
                      preferred_element_type=jnp.float32)
        h1g = jnp.maximum(h1g + b1g_ref[...], 0.0)                 # [TB, 256] f32

        # --- layer 2: no zero K rows; goal weights pre-tiled action_n times ---
        s = jnp.dot(h1o.astype(w2o_ref.dtype), w2o_ref[...],
                    preferred_element_type=jnp.float32)
        s = jnp.maximum(s + b2o_ref[...], 0.0)                     # [TB, A*16]
        g = jnp.dot(h1g.astype(w2g_ref.dtype), w2g_ref[...],
                    preferred_element_type=jnp.float32)
        g = jnp.maximum(g + b2g_ref[...], 0.0)                     # [TB, A*16]

        # --- grouped L2 reduction as one MXU matmul vs 0/1 block-indicator ---
        diff = s - g                                               # VPU elementwise
        d2 = jnp.dot(diff * diff, sel_ref[...],
                     preferred_element_type=jnp.float32)           # [TB, A_out]
        dist = jnp.sqrt(d2 + 1e-14)

        # --- QNetWrapper head -------------------------------------------------
        out_ref[...] = -(1.0 - jnp.exp(dist * alpha)) * inv_one_minus_gamma

    return kernel


def fuse_params(params, *, action_n, matmul_dtype=jnp.float32):
    """Host-side weight prep. Call ONCE per parameter set (hoisted out of the
    forward path): tiles the goal layer-2 weight/bias action_n times and builds
    the narrow [A*16, round_up(A,8)] group-selection matrix (padded cols = 0)."""
    am = MID_DIM * action_n
    a_out = _round_up(action_n, 8)

    sel = np.zeros((am, a_out), np.float32)
    for a in range(action_n):
        sel[a * MID_DIM:(a + 1) * MID_DIM, a] = 1.0

    return dict(
        w1o=params["w1o"].astype(matmul_dtype), b1o=params["b1o"],
        w1g=params["w1g"].astype(matmul_dtype), b1g=params["b1g"],
        w2o=params["w2o"].astype(matmul_dtype), b2o=params["b2o"],
        w2g=jnp.tile(params["w2g"], (1, action_n)).astype(matmul_dtype),
        b2g=jnp.tile(params["b2g"], (1, action_n)),
        sel=jnp.asarray(sel),
    )


@partial(jax.jit, static_argnames=("action_n", "gamma", "block_batch"))
def _qnet_forward(obs, goal, fp, *, action_n, gamma, block_batch):
    batch, do = obs.shape
    dg = goal.shape[1]
    a_out = fp["sel"].shape[1]
    mm_dtype = fp["w1o"].dtype

    # Batch tile: large (amortize ~0.35us/grid-step), sublane-aligned.  Keep at
    # least 2 grid steps when the batch allows it so the "parallel" axis can
    # shard across both v7x TensorCores (harmless on single-TC v5e/v6e).
    tb = _round_up(min(block_batch, batch), 8)
    if batch >= 16 and _round_up(batch, tb) // tb < 2:
        tb = _round_up((batch + 1) // 2, 8)
    b_pad = _round_up(batch, tb)

    obs_x = obs.astype(mm_dtype)
    goal_x = goal.astype(mm_dtype)
    if b_pad != batch:                       # ragged last tile; fuses inside jit
        obs_x = jnp.pad(obs_x, ((0, b_pad - batch), (0, 0)))
        goal_x = jnp.pad(goal_x, ((0, b_pad - batch), (0, 0)))

    def const(shape):                        # weights stay VMEM-resident
        n = len(shape)
        return pl.BlockSpec(shape, lambda i, _n=n: (0,) * _n)

    out = pl.pallas_call(
        make_qnet_kernel(gamma),
        out_shape=jax.ShapeDtypeStruct((b_pad, a_out), jnp.float32),
        grid=(b_pad // tb,),
        in_specs=[
            pl.BlockSpec((tb, do), lambda i: (i, 0)),   # obs:  batch-tiled
            pl.BlockSpec((tb, dg), lambda i: (i, 0)),   # goal: batch-tiled
            const(fp["w1o"].shape), const(fp["b1o"].shape),
            const(fp["w1g"].shape), const(fp["b1g"].shape),
            const(fp["w2o"].shape), const(fp["b2o"].shape),
            const(fp["w2g"].shape), const(fp["b2g"].shape),
            const(fp["sel"].shape),
        ],
        out_specs=pl.BlockSpec((tb, a_out), lambda i: (i, 0)),
        compiler_params=pltpu.CompilerParams(
            dimension_semantics=("parallel",),          # batch axis over TCs
            vmem_limit_bytes=48 * 1024 * 1024),
    )(obs_x, goal_x, fp["w1o"], fp["b1o"], fp["w1g"], fp["b1g"],
      fp["w2o"], fp["b2o"], fp["w2g"], fp["b2g"], fp["sel"])

    return out[:batch, :action_n]


def qnet_wrapper_forward(obs, goal, fused_params, *, action_n, gamma,
                         block_batch=2048):
    """fused_params must come from fuse_params() (call it once, reuse it)."""
    return _qnet_forward(obs, goal, fused_params, action_n=action_n,
                         gamma=gamma, block_batch=block_batch)


def init_params(key, obs_dim, goal_dim, action_n):
    """Deterministic torch-Linear-style init; weights stored as [in, out]."""
    def linear(key, fan_in, fan_out):
        k_w, k_b = jax.random.split(key)
        bound = 1.0 / np.sqrt(fan_in)
        w = jax.random.uniform(k_w, (fan_in, fan_out), jnp.float32, -bound, bound)
        b = jax.random.uniform(k_b, (1, fan_out), jnp.float32, -bound, bound)
        return w, b

    keys = jax.random.split(key, 4)
    w1o, b1o = linear(keys[0], obs_dim, HID)
    w2o, b2o = linear(keys[1], HID, MID_DIM * action_n)
    w1g, b1g = linear(keys[2], goal_dim, HID)
    w2g, b2g = linear(keys[3], HID, MID_DIM)
    return dict(w1o=w1o, b1o=b1o, w2o=w2o, b2o=b2o,
                w1g=w1g, b1g=b1g, w2g=w2g, b2g=b2g)


def reference_forward(obs, goal, params, *, action_n, gamma):
    s = jax.nn.relu(obs @ params["w1o"] + params["b1o"])
    s = jax.nn.relu(s @ params["w2o"] + params["b2o"])
    s = s.reshape(s.shape[0], action_n, MID_DIM)
    g = jax.nn.relu(goal @ params["w1g"] + params["b1g"])
    g = jax.nn.relu(g @ params["w2g"] + params["b2g"])
    dist = jnp.sqrt(jnp.sum(jnp.abs(s - g[:, None, :]) ** 2, axis=2) + 1e-14)
    alpha = np.log(gamma)
    return -(1.0 - jnp.exp(dist * alpha)) / (1.0 - gamma)


if __name__ == "__main__":
    gamma = 0.98
    obs_dim, goal_dim, action_n = 16, 8, 4

    key = jax.random.PRNGKey(0)
    k_p, k_obs, k_goal, k_obs2, k_goal2 = jax.random.split(key, 5)
    params = init_params(k_p, obs_dim, goal_dim, action_n)
    fused = fuse_params(params, action_n=action_n)      # hoisted, once per params

    # small case: single grid step
    batch = 8
    obs = jax.random.normal(k_obs, (batch, obs_dim), jnp.float32)
    goal = jax.random.normal(k_goal, (batch, goal_dim), jnp.float32)
    qval = jax.block_until_ready(
        qnet_wrapper_forward(obs, goal, fused, action_n=action_n, gamma=gamma))
    ref = reference_forward(obs, goal, params, action_n=action_n, gamma=gamma)
    np.testing.assert_allclose(np.asarray(qval), np.asarray(ref),
                               rtol=1e-4, atol=1e-4)

    # multi-step batch grid + ragged-tile padding path (TB=16, 40 -> 48)
    batch2 = 40
    obs2 = jax.random.normal(k_obs2, (batch2, obs_dim), jnp.float32)
    goal2 = jax.random.normal(k_goal2, (batch2, goal_dim), jnp.float32)
    qval2 = jax.block_until_ready(
        qnet_wrapper_forward(obs2, goal2, fused, action_n=action_n,
                             gamma=gamma, block_batch=16))
    ref2 = reference_forward(obs2, goal2, params, action_n=action_n, gamma=gamma)
    np.testing.assert_allclose(np.asarray(qval2), np.asarray(ref2),
                               rtol=1e-4, atol=1e-4)

    # default (large) tile path: auto-split keeps a 2-step parallel grid
    qval3 = jax.block_until_ready(
        qnet_wrapper_forward(obs2, goal2, fused, action_n=action_n, gamma=gamma))
    np.testing.assert_allclose(np.asarray(qval3), np.asarray(ref2),
                               rtol=1e-4, atol=1e-4)

    print("KERNEL_OK")
</pallas_src>

<mosaic_0001>
module attributes {stable_mosaic.version = 11 : i64} {
  func.func @kernel(%arg0: i32, %arg1: memref<8x16xf32, #tpu.memory_space<vmem>>, %arg2: memref<8x8xf32, #tpu.memory_space<vmem>>, %arg3: memref<16x256xf32, #tpu.memory_space<vmem>>, %arg4: memref<1x256xf32, #tpu.memory_space<vmem>>, %arg5: memref<8x256xf32, #tpu.memory_space<vmem>>, %arg6: memref<1x256xf32, #tpu.memory_space<vmem>>, %arg7: memref<256x64xf32, #tpu.memory_space<vmem>>, %arg8: memref<1x64xf32, #tpu.memory_space<vmem>>, %arg9: memref<256x64xf32, #tpu.memory_space<vmem>>, %arg10: memref<1x64xf32, #tpu.memory_space<vmem>>, %arg11: memref<64x8xf32, #tpu.memory_space<vmem>>, %arg12: memref<8x8xf32, #tpu.memory_space<vmem>>) attributes {dimension_semantics = [#tpu.dimension_semantics<parallel>], iteration_bounds = array<i64: 1>, scalar_prefetch = 0 : i64, scratch_operands = 0 : i64, tpu.core_type = #tpu.core_type<tc>, window_params = [{transform_indices = @transform_0, window_bounds = array<i64: 8, 16>}, {transform_indices = @transform_1, window_bounds = array<i64: 8, 8>}, {pipeline_mode = #tpu.pipeline_mode<synchronous>, transform_indices = @transform_2, window_bounds = array<i64: 16, 256>}, {pipeline_mode = #tpu.pipeline_mode<synchronous>, transform_indices = @transform_3, window_bounds = array<i64: 1, 256>}, {pipeline_mode = #tpu.pipeline_mode<synchronous>, transform_indices = @transform_4, window_bounds = array<i64: 8, 256>}, {pipeline_mode = #tpu.pipeline_mode<synchronous>, transform_indices = @transform_5, window_bounds = array<i64: 1, 256>}, {pipeline_mode = #tpu.pipeline_mode<synchronous>, transform_indices = @transform_6, window_bounds = array<i64: 256, 64>}, {pipeline_mode = #tpu.pipeline_mode<synchronous>, transform_indices = @transform_7, window_bounds = array<i64: 1, 64>}, {pipeline_mode = #tpu.pipeline_mode<synchronous>, transform_indices = @transform_8, window_bounds = array<i64: 256, 64>}, {pipeline_mode = #tpu.pipeline_mode<synchronous>, transform_indices = @transform_9, window_bounds = array<i64: 1, 64>}, {pipeline_mode = #tpu.pipeline_mode<synchronous>, transform_indices = @transform_10, window_bounds = array<i64: 64, 8>}, {transform_indices = @transform_11, window_bounds = array<i64: 8, 8>}]} {
    %c0 = arith.constant 0 : index
    %c0_0 = arith.constant 0 : index
    %0 = vector.load %arg1[%c0, %c0_0] : memref<8x16xf32, #tpu.memory_space<vmem>>, vector<8x16xf32>
    %c0_1 = arith.constant 0 : index
    %c0_2 = arith.constant 0 : index
    %1 = vector.load %arg3[%c0_1, %c0_2] : memref<16x256xf32, #tpu.memory_space<vmem>>, vector<16x256xf32>
    %cst = arith.constant dense<0.000000e+00> : vector<8x256xf32>
    %2 = tpu.matmul %0, %1, %cst {dimension_numbers = #tpu.dot_dimension_numbers<[1], [0], [0], [1], [0, 0, 1, 1], [], []>} : vector<8x16xf32>, vector<16x256xf32>, vector<8x256xf32> -> vector<8x256xf32>
    %c0_3 = arith.constant 0 : index
    %c0_4 = arith.constant 0 : index
    %3 = vector.load %arg4[%c0_3, %c0_4] : memref<1x256xf32, #tpu.memory_space<vmem>>, vector<1x256xf32>
    %4 = vector.broadcast %3 : vector<1x256xf32> to vector<8x256xf32>
    %5 = arith.addf %2, %4 : vector<8x256xf32>
    %cst_5 = arith.constant 0.000000e+00 : f32
    %6 = vector.broadcast %cst_5 : f32 to vector<8x256xf32>
    %7 = arith.maximumf %5, %6 : vector<8x256xf32>
    %c0_6 = arith.constant 0 : index
    %c0_7 = arith.constant 0 : index
    %8 = vector.load %arg2[%c0_6, %c0_7] : memref<8x8xf32, #tpu.memory_space<vmem>>, vector<8x8xf32>
    %c0_8 = arith.constant 0 : index
    %c0_9 = arith.constant 0 : index
    %9 = vector.load %arg5[%c0_8, %c0_9] : memref<8x256xf32, #tpu.memory_space<vmem>>, vector<8x256xf32>
    %cst_10 = arith.constant dense<0.000000e+00> : vector<8x256xf32>
    %10 = tpu.matmul %8, %9, %cst_10 {dimension_numbers = #tpu.dot_dimension_numbers<[1], [0], [0], [1], [0, 0, 1, 1], [], []>} : vector<8x8xf32>, vector<8x256xf32>, vector<8x256xf32> -> vector<8x256xf32>
    %c0_11 = arith.constant 0 : index
    %c0_12 = arith.constant 0 : index
    %11 = vector.load %arg6[%c0_11, %c0_12] : memref<1x256xf32, #tpu.memory_space<vmem>>, vector<1x256xf32>
    %12 = vector.broadcast %11 : vector<1x256xf32> to vector<8x256xf32>
    %13 = arith.addf %10, %12 : vector<8x256xf32>
    %cst_13 = arith.constant 0.000000e+00 : f32
    %14 = vector.broadcast %cst_13 : f32 to vector<8x256xf32>
    %15 = arith.maximumf %13, %14 : vector<8x256xf32>
    %c0_14 = arith.constant 0 : index
    %c0_15 = arith.constant 0 : index
    %16 = vector.load %arg7[%c0_14, %c0_15] : memref<256x64xf32, #tpu.memory_space<vmem>>, vector<256x64xf32>
    %cst_16 = arith.constant dense<0.000000e+00> : vector<8x64xf32>
    %17 = tpu.matmul %7, %16, %cst_16 {dimension_numbers = #tpu.dot_dimension_numbers<[1], [0], [0], [1], [0, 0, 1, 1], [], []>} : vector<8x256xf32>, vector<256x64xf32>, vector<8x64xf32> -> vector<8x64xf32>
    %c0_17 = arith.constant 0 : index
    %c0_18 = arith.constant 0 : index
    %18 = vector.load %arg8[%c0_17, %c0_18] : memref<1x64xf32, #tpu.memory_space<vmem>>, vector<1x64xf32>
    %19 = vector.broadcast %18 : vector<1x64xf32> to vector<8x64xf32>
    %20 = arith.addf %17, %19 : vector<8x64xf32>
    %cst_19 = arith.constant 0.000000e+00 : f32
    %21 = vector.broadcast %cst_19 : f32 to vector<8x64xf32>
    %22 = arith.maximumf %20, %21 : vector<8x64xf32>
    %c0_20 = arith.constant 0 : index
    %c0_21 = arith.constant 0 : index
    %23 = vector.load %arg9[%c0_20, %c0_21] : memref<256x64xf32, #tpu.memory_space<vmem>>, vector<256x64xf32>
    %cst_22 = arith.constant dense<0.000000e+00> : vector<8x64xf32>
    %24 = tpu.matmul %15, %23, %cst_22 {dimension_numbers = #tpu.dot_dimension_numbers<[1], [0], [0], [1], [0, 0, 1, 1], [], []>} : vector<8x256xf32>, vector<256x64xf32>, vector<8x64xf32> -> vector<8x64xf32>
    %c0_23 = arith.constant 0 : index
    %c0_24 = arith.constant 0 : index
    %25 = vector.load %arg10[%c0_23, %c0_24] : memref<1x64xf32, #tpu.memory_space<vmem>>, vector<1x64xf32>
    %26 = vector.broadcast %25 : vector<1x64xf32> to vector<8x64xf32>
    %27 = arith.addf %24, %26 : vector<8x64xf32>
    %cst_25 = arith.constant 0.000000e+00 : f32
    %28 = vector.broadcast %cst_25 : f32 to vector<8x64xf32>
    %29 = arith.maximumf %27, %28 : vector<8x64xf32>
    %30 = arith.subf %22, %29 : vector<8x64xf32>
    %31 = arith.mulf %30, %30 : vector<8x64xf32>
    %c0_26 = arith.constant 0 : index
    %c0_27 = arith.constant 0 : index
    %32 = vector.load %arg11[%c0_26, %c0_27] : memref<64x8xf32, #tpu.memory_space<vmem>>, vector<64x8xf32>
    %cst_28 = arith.constant dense<0.000000e+00> : vector<8x8xf32>
    %33 = tpu.matmul %31, %32, %cst_28 {dimension_numbers = #tpu.dot_dimension_numbers<[1], [0], [0], [1], [0, 0, 1, 1], [], []>} : vector<8x64xf32>, vector<64x8xf32>, vector<8x8xf32> -> vector<8x8xf32>
    %cst_29 = arith.constant 9.99999982E-15 : f32
    %34 = vector.broadcast %cst_29 : f32 to vector<8x8xf32>
    %35 = arith.addf %33, %34 : vector<8x8xf32>
    %36 = math.sqrt %35 : vector<8x8xf32>
    %cst_30 = arith.constant -0.0202027075 : f32
    %37 = vector.broadcast %cst_30 : f32 to vector<8x8xf32>
    %38 = arith.mulf %36, %37 : vector<8x8xf32>
    %39 = math.exp %38 : vector<8x8xf32>
    %cst_31 = arith.constant 1.000000e+00 : f32
    %40 = vector.broadcast %cst_31 : f32 to vector<8x8xf32>
    %41 = arith.subf %40, %39 : vector<8x8xf32>
    %cst_32 = arith.constant 0.000000e+00 : f32
    %42 = vector.broadcast %cst_32 : f32 to vector<8x8xf32>
    %43 = arith.subf %42, %41 : vector<8x8xf32>
    %cst_33 = arith.constant 5.000000e+01 : f32
    %44 = vector.broadcast %cst_33 : f32 to vector<8x8xf32>
    %45 = arith.mulf %43, %44 : vector<8x8xf32>
    %c0_34 = arith.constant 0 : index
    %c0_35 = arith.constant 0 : index
    %46 = vector.load %arg12[%c0_34, %c0_35] : memref<8x8xf32, #tpu.memory_space<vmem>>, vector<8x8xf32>
    tpu.vector_store %arg12[%c0_34, %c0_35], %45 {strides = array<i32>} : memref<8x8xf32, #tpu.memory_space<vmem>>, vector<8x8xf32>,
    return
  }
  func.func @transform_0(%arg0: i32) -> (i32, i32) {
    %c0_i32 = arith.constant 0 : i32
    %c0_i32_0 = arith.constant 0 : i32
    return %arg0, %c0_i32 : i32, i32
  }
  func.func @transform_1(%arg0: i32) -> (i32, i32) {
    %c0_i32 = arith.constant 0 : i32
    %c0_i32_0 = arith.constant 0 : i32
    return %arg0, %c0_i32 : i32, i32
  }
  func.func @transform_2(%arg0: i32) -> (i32, i32) {
    %c0_i32 = arith.constant 0 : i32
    %c0_i32_0 = arith.constant 0 : i32
    %c0_i32_1 = arith.constant 0 : i32
    return %c0_i32, %c0_i32_0 : i32, i32
  }
  func.func @transform_3(%arg0: i32) -> (i32, i32) {
    %c0_i32 = arith.constant 0 : i32
    %c0_i32_0 = arith.constant 0 : i32
    %c0_i32_1 = arith.constant 0 : i32
    return %c0_i32, %c0_i32_0 : i32, i32
  }
  func.func @transform_4(%arg0: i32) -> (i32, i32) {
    %c0_i32 = arith.constant 0 : i32
    %c0_i32_0 = arith.constant 0 : i32
    %c0_i32_1 = arith.constant 0 : i32
    return %c0_i32, %c0_i32_0 : i32, i32
  }
  func.func @transform_5(%arg0: i32) -> (i32, i32) {
    %c0_i32 = arith.constant 0 : i32
    %c0_i32_0 = arith.constant 0 : i32
    %c0_i32_1 = arith.constant 0 : i32
    return %c0_i32, %c0_i32_0 : i32, i32
  }
  func.func @transform_6(%arg0: i32) -> (i32, i32) {
    %c0_i32 = arith.constant 0 : i32
    %c0_i32_0 = arith.constant 0 : i32
    %c0_i32_1 = arith.constant 0 : i32
    return %c0_i32, %c0_i32_0 : i32, i32
  }
  func.func @transform_7(%arg0: i32) -> (i32, i32) {
    %c0_i32 = arith.constant 0 : i32
    %c0_i32_0 = arith.constant 0 : i32
    %c0_i32_1 = arith.constant 0 : i32
    return %c0_i32, %c0_i32_0 : i32, i32
  }
  func.func @transform_8(%arg0: i32) -> (i32, i32) {
    %c0_i32 = arith.constant 0 : i32
    %c0_i32_0 = arith.constant 0 : i32
    %c0_i32_1 = arith.constant 0 : i32
    return %c0_i32, %c0_i32_0 : i32, i32
  }
  func.func @transform_9(%arg0: i32) -> (i32, i32) {
    %c0_i32 = arith.constant 0 : i32
    %c0_i32_0 = arith.constant 0 : i32
    %c0_i32_1 = arith.constant 0 : i32
    return %c0_i32, %c0_i32_0 : i32, i32
  }
  func.func @transform_10(%arg0: i32) -> (i32, i32) {
    %c0_i32 = arith.constant 0 : i32
    %c0_i32_0 = arith.constant 0 : i32
    %c0_i32_1 = arith.constant 0 : i32
    return %c0_i32, %c0_i32_0 : i32, i32
  }
  func.func @transform_11(%arg0: i32) -> (i32, i32) {
    %c0_i32 = arith.constant 0 : i32
    %c0_i32_0 = arith.constant 0 : i32
    return %arg0, %c0_i32 : i32, i32
  }
}

</mosaic_0001>

<llo_original>
// kernel: _qnet_forward.1
$region0: #{_qnet_forward.1}
  #allocation0 [shape = 'u32[]', space=smem, size = 0x4, offset = 0x4, fixed_abs, tag = 'smem constant byte address 0x4 - core index']
  #allocation1 [shape = 'u32[144,128]{1,0:T(1,128)}', space=vmem, size = 0x12000, scoped, tag = 'internal scratch']
  %s0 = inlined_call_operand.vmem [shape: f32[8,16], index: 0, kind: input, shape index: {}]
  %s1 = inlined_call_operand.vmem [shape: f32[8,8], index: 1, kind: input, shape index: {}]
  %s2 = inlined_call_operand.vmem [shape: f32[16,256], index: 2, kind: input, shape index: {}]
  %s3 = inlined_call_operand.vmem [shape: f32[1,256], index: 3, kind: input, shape index: {}]
  %s4 = inlined_call_operand.vmem [shape: f32[8,256], index: 4, kind: input, shape index: {}]
  %s5 = inlined_call_operand.vmem [shape: f32[1,256], index: 5, kind: input, shape index: {}]
  %s6 = inlined_call_operand.vmem [shape: f32[256,64], index: 6, kind: input, shape index: {}]
  %s7 = inlined_call_operand.vmem [shape: f32[1,64], index: 7, kind: input, shape index: {}]
  %s8 = inlined_call_operand.vmem [shape: f32[256,64], index: 8, kind: input, shape index: {}]
  %s9 = inlined_call_operand.vmem [shape: f32[1,64], index: 9, kind: input, shape index: {}]
  %s10 = inlined_call_operand.vmem [shape: f32[64,8], index: 10, kind: input, shape index: {}]
  %s11 = inlined_call_operand.vmem [shape: f32[8,8], index: 11, kind: output, shape index: {}]
  %s12 = sld [smem:[#allocation0]]
  $region54: #{_qnet_forward.1} parent=0
    _
  %s14 = ssub.s32 1, %s12
  %s15 = scalar_select 0, %s14, %s12
  // Predicated region
  $region2: #{_qnet_forward.1} parent=0 // pred_check
    _
  $region3: #{_qnet_forward.1} parent=0 // pred_check_branch
    %17 = sbr.rel (0) target = $region5
  $region4: #{_qnet_forward.1} parent=0 // pred_region
    _
  $region5: #{_qnet_forward.1} parent=0 // pred_fallthru
    _
  // Predicated region
  $region6: #{_qnet_forward.1} parent=0 // pred_check
    _
  $region7: #{_qnet_forward.1} parent=0 // pred_check_branch
    %19 = sbr.rel (0) target = $region9
  $region8: #{_qnet_forward.1} parent=0 // pred_region
    _
  $region9: #{_qnet_forward.1} parent=0 // pred_fallthru
    _
  // Predicated region
  $region10: #{_qnet_forward.1} parent=0 // pred_check
    _
  $region11: #{_qnet_forward.1} parent=0 // pred_check_branch
    %21 = sbr.rel (0) target = $region13
  $region12: #{_qnet_forward.1} parent=0 // pred_region
    _
  $region13: #{_qnet_forward.1} parent=0 // pred_fallthru
    _
  // Predicated region
  $region14: #{_qnet_forward.1} parent=0 // pred_check
    _
  $region15: #{_qnet_forward.1} parent=0 // pred_check_branch
    %23 = sbr.rel (0) target = $region17
  $region16: #{_qnet_forward.1} parent=0 // pred_region
    _
  $region17: #{_qnet_forward.1} parent=0 // pred_fallthru
    _
  // Predicated region
  $region18: #{_qnet_forward.1} parent=0 // pred_check
    _
  $region19: #{_qnet_forward.1} parent=0 // pred_check_branch
    %25 = sbr.rel (0) target = $region21
  $region20: #{_qnet_forward.1} parent=0 // pred_region
    _
  $region21: #{_qnet_forward.1} parent=0 // pred_fallthru
    _
  // Predicated region
  $region22: #{_qnet_forward.1} parent=0 // pred_check
    _
  $region23: #{_qnet_forward.1} parent=0 // pred_check_branch
    %27 = sbr.rel (0) target = $region25
  $region24: #{_qnet_forward.1} parent=0 // pred_region
    _
  $region25: #{_qnet_forward.1} parent=0 // pred_fallthru
    _
  // Predicated region
  $region26: #{_qnet_forward.1} parent=0 // pred_check
    _
  $region27: #{_qnet_forward.1} parent=0 // pred_check_branch
    %29 = sbr.rel (0) target = $region29
  $region28: #{_qnet_forward.1} parent=0 // pred_region
    _
  $region29: #{_qnet_forward.1} parent=0 // pred_fallthru
    _
  // Predicated region
  $region30: #{_qnet_forward.1} parent=0 // pred_check
    _
  $region31: #{_qnet_forward.1} parent=0 // pred_check_branch
    %31 = sbr.rel (0) target = $region33
  $region32: #{_qnet_forward.1} parent=0 // pred_region
    _
  $region33: #{_qnet_forward.1} parent=0 // pred_fallthru
    _
  // Predicated region
  $region34: #{_qnet_forward.1} parent=0 // pred_check
    _
  $region35: #{_qnet_forward.1} parent=0 // pred_check_branch
    %33 = sbr.rel (0) target = $region37
  $region36: #{_qnet_forward.1} parent=0 // pred_region
    _
  $region37: #{_qnet_forward.1} parent=0 // pred_fallthru
    _
  // Predicated region
  $region38: #{_qnet_forward.1} parent=0 // pred_check
    _
  $region39: #{_qnet_forward.1} parent=0 // pred_check_branch
    %35 = sbr.rel (0) target = $region41
  $region40: #{_qnet_forward.1} parent=0 // pred_region
    _
  $region41: #{_qnet_forward.1} parent=0 // pred_fallthru
    _
  // Predicated region
  $region42: #{_qnet_forward.1} parent=0 // pred_check
    _
  $region43: #{_qnet_forward.1} parent=0 // pred_check_branch
    %37 = sbr.rel (0) target = $region45
  $region44: #{_qnet_forward.1} parent=0 // pred_region
    _
  $region45: #{_qnet_forward.1} parent=0 // pred_fallthru
    _
  %v38 = vld [vmem:[%s0] sm:$0xff]
  %v39 = vld [vmem:[%s2] sm:$0xff]
  %v40 = vld [vmem:[%s2 + $0x8] sm:$0xff]
  %v41 = vld [vmem:[%s2 + $0x10] sm:$0xff]
  %v42 = vld [vmem:[%s2 + $0x18] sm:$0xff]
  %v43 = vld [vmem:[%s3] sm:$0x3]
  %v45 = vlaneseq
  %v46 = vshrl.u32 %v45, 7
  %v47 = vsub.s32 0, %v46
  %v48 = vrot.slane %v43, %v47
  %v49 = vlaneseq
  %v50 = vshrl.u32 %v49, 7
  %v51 = vsub.s32 1, %v50
  %v52 = vrot.slane %v43, %v51
  %vm55 = vcmask 130048
  %v57 = vsel %vm55, %v38, 0
  %59 = vmatprep.subr.mxu0 0.0
  %60 = vmatpush1.msra.mxu0 0.0
  %61 = vmatprep.subr.mxu0 0.0
  %62 = vmatpush1.msra.mxu0 0.0
  %63 = vmatprep.subr.mxu0 0.0
  %64 = vmatpush1.msra.mxu0 0.0
  %65 = vmatprep.subr.mxu0 0.0
  %66 = vmatpush1.msra.mxu0 0.0
  %67 = vmatprep.subr.mxu0 0.0
  %68 = vmatpush1.msra.mxu0 0.0
  %69 = vmatprep.subr.mxu0 0.0
  %70 = vmatpush1.msra.mxu0 0.0
  %71 = vmatprep.subr.mxu0 0.0
  %72 = vmatpush1.msra.mxu0 0.0
  %73 = vmatprep.subr.mxu0 0.0
  %74 = vmatpush1.msra.mxu0 0.0
  %75 = vmatprep.subr.mxu0 0.0
  %76 = vmatpush1.msra.mxu0 0.0
  %77 = vmatprep.subr.mxu0 0.0
  %78 = vmatpush1.msra.mxu0 0.0
  %79 = vmatprep.subr.mxu0 0.0
  %80 = vmatpush1.msra.mxu0 0.0
  %81 = vmatprep.subr.mxu0 0.0
  %82 = vmatpush1.msra.mxu0 0.0
  %83 = vmatprep.subr.mxu0 0.0
  %84 = vmatpush1.msra.mxu0 0.0
  %85 = vmatprep.subr.mxu0 0.0
  %86 = vmatpush1.msra.mxu0 0.0
  %87 = vmatprep.subr.mxu0 %v42
  %88 = vmatpush1.msra.mxu0 %v41
  %89 = vmatprep.subr.mxu0 %v40
  %90 = vmatpush1.msra.mxu0 %v39
  %91 = vmatprep.subr.mxu0 0.0
  %92 = vmatpush2.msra.mxu0 0.0
  %93 = vmatprep.subr.mxu0 0.0
  %94 = vmatpush2.msra.mxu0 0.0
  %95 = vmatprep.subr.mxu0 0.0
  %96 = vmatpush2.msra.mxu0 0.0
  %97 = vmatprep.subr.mxu0 0.0
  %98 = vmatpush2.msra.mxu0 0.0
  %99 = vmatprep.subr.mxu0 0.0
  %100 = vmatpush2.msra.mxu0 0.0
  %101 = vmatprep.subr.mxu0 0.0
  %102 = vmatpush2.msra.mxu0 0.0
  %103 = vmatprep.subr.mxu0 0.0
  %104 = vmatpush2.msra.mxu0 0.0
  %105 = vmatprep.subr.mxu0 0.0
  %106 = vmatpush2.msra.mxu0 0.0
  %107 = vmatprep.subr.mxu0 0.0
  %108 = vmatpush2.msra.mxu0 0.0
  %109 = vmatprep.subr.mxu0 0.0
  %110 = vmatpush2.msra.mxu0 0.0
  %111 = vmatprep.subr.mxu0 0.0
  %112 = vmatpush2.msra.mxu0 0.0
  %113 = vmatprep.subr.mxu0 0.0
  %114 = vmatpush2.msra.mxu0 0.0
  %115 = vmatprep.subr.mxu0 0.0
  %116 = vmatpush2.msra.mxu0 0.0
  %117 = vmatprep.subr.mxu0 0.0
  %118 = vmatpush2.msra.mxu0 0.0
  %119 = vmatprep.subr.mxu0 0.0
  %120 = vmatpush2.msra.mxu0 0.0
  %121 = vmatprep.subr.mxu0 0.0
  %122 = vmatpush2.msra.mxu0 0.0
  %123 = vmatprep.mubr.f32.mxu0 0.0
  %124 = vmatmul.mubr.f32.gmra.mxu0 %v57
  %v125 = vpop.f32.mrf.mxu0
  %v126 = vadd.f32 %v48, %v125
  %v127 = vpop.f32.mrf.mxu0
  %v128 = vadd.f32 %v52, %v127
  %129 = vdwg.mxu0
  %v130 = vmax.f32 %v126, 0.0
  %v131 = vmax.f32 %v128, 0.0
  %v132 = vld [vmem:[%s1] sm:$0xff]
  %v133 = vld [vmem:[%s4] sm:$0xff]
  %v134 = vld [vmem:[%s4 + $0x8] sm:$0xff]
  %v135 = vld [vmem:[%s5] sm:$0x3]
  %v137 = vlaneseq
  %v138 = vshrl.u32 %v137, 7
  %v139 = vsub.s32 0, %v138
  %v140 = vrot.slane %v135, %v139
  %v141 = vlaneseq
  %v142 = vshrl.u32 %v141, 7
  %v143 = vsub.s32 1, %v142
  %v144 = vrot.slane %v135, %v143
  %vm147 = vcmask 64512
  %v149 = vsel %vm147, %v132, 0
  %151 = vmatprep.subr.mxu0 0.0
  %152 = vmatpush1.msra.mxu0 0.0
  %153 = vmatprep.subr.mxu0 0.0
  %154 = vmatpush1.msra.mxu0 0.0
  %155 = vmatprep.subr.mxu0 0.0
  %156 = vmatpush1.msra.mxu0 0.0
  %157 = vmatprep.subr.mxu0 0.0
  %158 = vmatpush1.msra.mxu0 0.0
  %159 = vmatprep.subr.mxu0 0.0
  %160 = vmatpush1.msra.mxu0 0.0
  %161 = vmatprep.subr.mxu0 0.0
  %162 = vmatpush1.msra.mxu0 0.0
  %163 = vmatprep.subr.mxu0 0.0
  %164 = vmatpush1.msra.mxu0 0.0
  %165 = vmatprep.subr.mxu0 0.0
  %166 = vmatpush1.msra.mxu0 0.0
  %167 = vmatprep.subr.mxu0 0.0
  %168 = vmatpush1.msra.mxu0 0.0
  %169 = vmatprep.subr.mxu0 0.0
  %170 = vmatpush1.msra.mxu0 0.0
  %171 = vmatprep.subr.mxu0 0.0
  %172 = vmatpush1.msra.mxu0 0.0
  %173 = vmatprep.subr.mxu0 0.0
  %174 = vmatpush1.msra.mxu0 0.0
  %175 = vmatprep.subr.mxu0 0.0
  %176 = vmatpush1.msra.mxu0 0.0
  %177 = vmatprep.subr.mxu0 0.0
  %178 = vmatpush1.msra.mxu0 0.0
  %179 = vmatprep.subr.mxu0 0.0
  %180 = vmatpush1.msra.mxu0 0.0
  %181 = vmatprep.subr.mxu0 %v134
  %182 = vmatpush1.msra.mxu0 %v133
  %183 = vmatprep.subr.mxu0 0.0
  %184 = vmatpush2.msra.mxu0 0.0
  %185 = vmatprep.subr.mxu0 0.0
  %186 = vmatpush2.msra.mxu0 0.0
  %187 = vmatprep.subr.mxu0 0.0
  %188 = vmatpush2.msra.mxu0 0.0
  %189 = vmatprep.subr.mxu0 0.0
  %190 = vmatpush2.msra.mxu0 0.0
  %191 = vmatprep.subr.mxu0 0.0
  %192 = vmatpush2.msra.mxu0 0.0
  %193 = vmatprep.subr.mxu0 0.0
  %194 = vmatpush2.msra.mxu0 0.0
  %195 = vmatprep.subr.mxu0 0.0
  %196 = vmatpush2.msra.mxu0 0.0
  %197 = vmatprep.subr.mxu0 0.0
  %198 = vmatpush2.msra.mxu0 0.0
  %199 = vmatprep.subr.mxu0 0.0
  %200 = vmatpush2.msra.mxu0 0.0
  %201 = vmatprep.subr.mxu0 0.0
  %202 = vmatpush2.msra.mxu0 0.0
  %203 = vmatprep.subr.mxu0 0.0
  %204 = vmatpush2.msra.mxu0 0.0
  %205 = vmatprep.subr.mxu0 0.0
  %206 = vmatpush2.msra.mxu0 0.0
  %207 = vmatprep.subr.mxu0 0.0
  %208 = vmatpush2.msra.mxu0 0.0
  %209 = vmatprep.subr.mxu0 0.0
  %210 = vmatpush2.msra.mxu0 0.0
  %211 = vmatprep.subr.mxu0 0.0
  %212 = vmatpush2.msra.mxu0 0.0
  %213 = vmatprep.subr.mxu0 0.0
  %214 = vmatpush2.msra.mxu0 0.0
  %215 = vmatprep.mubr.f32.mxu0 0.0
  %216 = vmatmul.mubr.f32.gmra.mxu0 %v149
  %v217 = vpop.f32.mrf.mxu0
  %v218 = vadd.f32 %v140, %v217
  %v219 = vpop.f32.mrf.mxu0
  %v220 = vadd.f32 %v144, %v219
  %221 = vdwg.mxu0
  %v222 = vmax.f32 %v218, 0.0
  %v223 = vmax.f32 %v220, 0.0
  %v224 = vld [vmem:[%s6] sm:$0xff]
  %v225 = vld [vmem:[%s6 + $0x8] sm:$0xff]
  %v226 = vld [vmem:[%s6 + $0x10] sm:$0xff]
  %v227 = vld [vmem:[%s6 + $0x18] sm:$0xff]
  %v228 = vld [vmem:[%s6 + $0x20] sm:$0xff]
  %v229 = vld [vmem:[%s6 + $0x28] sm:$0xff]
  %v230 = vld [vmem:[%s6 + $0x30] sm:$0xff]
  %v231 = vld [vmem:[%s6 + $0x38] sm:$0xff]
  %v232 = vld [vmem:[%s6 + $0x40] sm:$0xff]
  %v233 = vld [vmem:[%s6 + $0x48] sm:$0xff]
  %v234 = vld [vmem:[%s6 + $0x50] sm:$0xff]
  %v235 = vld [vmem:[%s6 + $0x58] sm:$0xff]
  %v236 = vld [vmem:[%s6 + $0x60] sm:$0xff]
  %v237 = vld [vmem:[%s6 + $0x68] sm:$0xff]
  %v238 = vld [vmem:[%s6 + $0x70] sm:$0xff]
  %v239 = vld [vmem:[%s6 + $0x78] sm:$0xff]
  %v240 = vld [vmem:[%s6 + $0x80] sm:$0xff]
  %v241 = vld [vmem:[%s6 + $0x88] sm:$0xff]
  %v242 = vld [vmem:[%s6 + $0x90] sm:$0xff]
  %v243 = vld [vmem:[%s6 + $0x98] sm:$0xff]
  %v244 = vld [vmem:[%s6 + $0xa0] sm:$0xff]
  %v245 = vld [vmem:[%s6 + $0xa8] sm:$0xff]
  %v246 = vld [vmem:[%s6 + $0xb0] sm:$0xff]
  %v247 = vld [vmem:[%s6 + $0xb8] sm:$0xff]
  %v248 = vld [vmem:[%s6 + $0xc0] sm:$0xff]
  %v249 = vld [vmem:[%s6 + $0xc8] sm:$0xff]
  %v250 = vld [vmem:[%s6 + $0xd0] sm:$0xff]
  %v251 = vld [vmem:[%s6 + $0xd8] sm:$0xff]
  %v252 = vld [vmem:[%s6 + $0xe0] sm:$0xff]
  %v253 = vld [vmem:[%s6 + $0xe8] sm:$0xff]
  %v254 = vld [vmem:[%s6 + $0xf0] sm:$0xff]
  %v255 = vld [vmem:[%s6 + $0xf8] sm:$0xff]
  %v256 = vld [vmem:[%s7] sm:$0x1]
  %v258 = vlaneseq
  %v259 = vshrl.u32 %v258, 7
  %v260 = vsub.s32 0, %v259
  %v261 = vrot.slane %v256, %v260
  %263 = vmatprep.subr.mxu0 0.0
  %264 = vmatpush1.msra.mxu0 %v239
  %265 = vmatprep.subr.mxu0 0.0
  %266 = vmatpush1.msra.mxu0 %v238
  %267 = vmatprep.subr.mxu0 0.0
  %268 = vmatpush1.msra.mxu0 %v237
  %269 = vmatprep.subr.mxu0 0.0
  %270 = vmatpush1.msra.mxu0 %v236
  %271 = vmatprep.subr.mxu0 0.0
  %272 = vmatpush1.msra.mxu0 %v235
  %273 = vmatprep.subr.mxu0 0.0
  %274 = vmatpush1.msra.mxu0 %v234
  %275 = vmatprep.subr.mxu0 0.0
  %276 = vmatpush1.msra.mxu0 %v233
  %277 = vmatprep.subr.mxu0 0.0
  %278 = vmatpush1.msra.mxu0 %v232
  %279 = vmatprep.subr.mxu0 0.0
  %280 = vmatpush1.msra.mxu0 %v231
  %281 = vmatprep.subr.mxu0 0.0
  %282 = vmatpush1.msra.mxu0 %v230
  %283 = vmatprep.subr.mxu0 0.0
  %284 = vmatpush1.msra.mxu0 %v229
  %285 = vmatprep.subr.mxu0 0.0
  %286 = vmatpush1.msra.mxu0 %v228
  %287 = vmatprep.subr.mxu0 0.0
  %288 = vmatpush1.msra.mxu0 %v227
  %289 = vmatprep.subr.mxu0 0.0
  %290 = vmatpush1.msra.mxu0 %v226
  %291 = vmatprep.subr.mxu0 0.0
  %292 = vmatpush1.msra.mxu0 %v225
  %293 = vmatprep.subr.mxu0 0.0
  %294 = vmatpush1.msra.mxu0 %v224
  %295 = vmatprep.subr.mxu0 0.0
  %296 = vmatpush2.msra.mxu0 %v255
  %297 = vmatprep.subr.mxu0 0.0
  %298 = vmatpush2.msra.mxu0 %v254
  %299 = vmatprep.subr.mxu0 0.0
  %300 = vmatpush2.msra.mxu0 %v253
  %301 = vmatprep.subr.mxu0 0.0
  %302 = vmatpush2.msra.mxu0 %v252
  %303 = vmatprep.subr.mxu0 0.0
  %304 = vmatpush2.msra.mxu0 %v251
  %305 = vmatprep.subr.mxu0 0.0
  %306 = vmatpush2.msra.mxu0 %v250
  %307 = vmatprep.subr.mxu0 0.0
  %308 = vmatpush2.msra.mxu0 %v249
  %309 = vmatprep.subr.mxu0 0.0
  %310 = vmatpush2.msra.mxu0 %v248
  %311 = vmatprep.subr.mxu0 0.0
  %312 = vmatpush2.msra.mxu0 %v247
  %313 = vmatprep.subr.mxu0 0.0
  %314 = vmatpush2.msra.mxu0 %v246
  %315 = vmatprep.subr.mxu0 0.0
  %316 = vmatpush2.msra.mxu0 %v245
  %317 = vmatprep.subr.mxu0 0.0
  %318 = vmatpush2.msra.mxu0 %v244
  %319 = vmatprep.subr.mxu0 0.0
  %320 = vmatpush2.msra.mxu0 %v243
  %321 = vmatprep.subr.mxu0 0.0
  %322 = vmatpush2.msra.mxu0 %v242
  %323 = vmatprep.subr.mxu0 0.0
  %324 = vmatpush2.msra.mxu0 %v241
  %325 = vmatprep.subr.mxu0 0.0
  %326 = vmatpush2.msra.mxu0 %v240
  %327 = vmatprep.mubr.f32.mxu0 %v131
  %328 = vmatmul.mubr.f32.gmra.mxu0 %v130
  %v329 = vpop.f32.mrf.mxu0
  %v330 = vadd.f32 %v261, %v329
  %v331 = vpop.f32.mrf.mxu0
  %332 = vdwg.mxu0
  %v333 = vmax.f32 %v330, 0.0
  %v334 = vld [vmem:[%s8] sm:$0xff]
  %v335 = vld [vmem:[%s8 + $0x8] sm:$0xff]
  %v336 = vld [vmem:[%s8 + $0x10] sm:$0xff]
  %v337 = vld [vmem:[%s8 + $0x18] sm:$0xff]
  %v338 = vld [vmem:[%s8 + $0x20] sm:$0xff]
  %v339 = vld [vmem:[%s8 + $0x28] sm:$0xff]
  %v340 = vld [vmem:[%s8 + $0x30] sm:$0xff]
  %v341 = vld [vmem:[%s8 + $0x38] sm:$0xff]
  %v342 = vld [vmem:[%s8 + $0x40] sm:$0xff]
  %v343 = vld [vmem:[%s8 + $0x48] sm:$0xff]
  %v344 = vld [vmem:[%s8 + $0x50] sm:$0xff]
  %v345 = vld [vmem:[%s8 + $0x58] sm:$0xff]
  %v346 = vld [vmem:[%s8 + $0x60] sm:$0xff]
  %v347 = vld [vmem:[%s8 + $0x68] sm:$0xff]
  %v348 = vld [vmem:[%s8 + $0x70] sm:$0xff]
  %v349 = vld [vmem:[%s8 + $0x78] sm:$0xff]
  %v350 = vld [vmem:[%s8 + $0x80] sm:$0xff]
  %v351 = vld [vmem:[%s8 + $0x88] sm:$0xff]
  %v352 = vld [vmem:[%s8 + $0x90] sm:$0xff]
  %v353 = vld [vmem:[%s8 + $0x98] sm:$0xff]
  %v354 = vld [vmem:[%s8 + $0xa0] sm:$0xff]
  %v355 = vld [vmem:[%s8 + $0xa8] sm:$0xff]
  %v356 = vld [vmem:[%s8 + $0xb0] sm:$0xff]
  %v357 = vld [vmem:[%s8 + $0xb8] sm:$0xff]
  %v358 = vld [vmem:[%s8 + $0xc0] sm:$0xff]
  %v359 = vld [vmem:[%s8 + $0xc8] sm:$0xff]
  %v360 = vld [vmem:[%s8 + $0xd0] sm:$0xff]
  %v361 = vld [vmem:[%s8 + $0xd8] sm:$0xff]
  %v362 = vld [vmem:[%s8 + $0xe0] sm:$0xff]
  %v363 = vld [vmem:[%s8 + $0xe8] sm:$0xff]
  %v364 = vld [vmem:[%s8 + $0xf0] sm:$0xff]
  %v365 = vld [vmem:[%s8 + $0xf8] sm:$0xff]
  %v366 = vld [vmem:[%s9] sm:$0x1]
  %v368 = vlaneseq
  %v369 = vshrl.u32 %v368, 7
  %v370 = vsub.s32 0, %v369
  %v371 = vrot.slane %v366, %v370
  %373 = vmatprep.subr.mxu0 0.0
  %374 = vmatpush1.msra.mxu0 %v349
  %375 = vmatprep.subr.mxu0 0.0
  %376 = vmatpush1.msra.mxu0 %v348
  %377 = vmatprep.subr.mxu0 0.0
  %378 = vmatpush1.msra.mxu0 %v347
  %379 = vmatprep.subr.mxu0 0.0
  %380 = vmatpush1.msra.mxu0 %v346
  %381 = vmatprep.subr.mxu0 0.0
  %382 = vmatpush1.msra.mxu0 %v345
  %383 = vmatprep.subr.mxu0 0.0
  %384 = vmatpush1.msra.mxu0 %v344
  %385 = vmatprep.subr.mxu0 0.0
  %386 = vmatpush1.msra.mxu0 %v343
  %387 = vmatprep.subr.mxu0 0.0
  %388 = vmatpush1.msra.mxu0 %v342
  %389 = vmatprep.subr.mxu0 0.0
  %390 = vmatpush1.msra.mxu0 %v341
  %391 = vmatprep.subr.mxu0 0.0
  %392 = vmatpush1.msra.mxu0 %v340
  %393 = vmatprep.subr.mxu0 0.0
  %394 = vmatpush1.msra.mxu0 %v339
  %395 = vmatprep.subr.mxu0 0.0
  %396 = vmatpush1.msra.mxu0 %v338
  %397 = vmatprep.subr.mxu0 0.0
  %398 = vmatpush1.msra.mxu0 %v337
  %399 = vmatprep.subr.mxu0 0.0
  %400 = vmatpush1.msra.mxu0 %v336
  %401 = vmatprep.subr.mxu0 0.0
  %402 = vmatpush1.msra.mxu0 %v335
  %403 = vmatprep.subr.mxu0 0.0
  %404 = vmatpush1.msra.mxu0 %v334
  %405 = vmatprep.subr.mxu0 0.0
  %406 = vmatpush2.msra.mxu0 %v365
  %407 = vmatprep.subr.mxu0 0.0
  %408 = vmatpush2.msra.mxu0 %v364
  %409 = vmatprep.subr.mxu0 0.0
  %410 = vmatpush2.msra.mxu0 %v363
  %411 = vmatprep.subr.mxu0 0.0
  %412 = vmatpush2.msra.mxu0 %v362
  %413 = vmatprep.subr.mxu0 0.0
  %414 = vmatpush2.msra.mxu0 %v361
  %415 = vmatprep.subr.mxu0 0.0
  %416 = vmatpush2.msra.mxu0 %v360
  %417 = vmatprep.subr.mxu0 0.0
  %418 = vmatpush2.msra.mxu0 %v359
  %419 = vmatprep.subr.mxu0 0.0
  %420 = vmatpush2.msra.mxu0 %v358
  %421 = vmatprep.subr.mxu0 0.0
  %422 = vmatpush2.msra.mxu0 %v357
  %423 = vmatprep.subr.mxu0 0.0
  %424 = vmatpush2.msra.mxu0 %v356
  %425 = vmatprep.subr.mxu0 0.0
  %426 = vmatpush2.msra.mxu0 %v355
  %427 = vmatprep.subr.mxu0 0.0
  %428 = vmatpush2.msra.mxu0 %v354
  %429 = vmatprep.subr.mxu0 0.0
  %430 = vmatpush2.msra.mxu0 %v353
  %431 = vmatprep.subr.mxu0 0.0
  %432 = vmatpush2.msra.mxu0 %v352
  %433 = vmatprep.subr.mxu0 0.0
  %434 = vmatpush2.msra.mxu0 %v351
  %435 = vmatprep.subr.mxu0 0.0
  %436 = vmatpush2.msra.mxu0 %v350
  %437 = vmatprep.mubr.f32.mxu0 %v223
  %438 = vmatmul.mubr.f32.gmra.mxu0 %v222
  %v439 = vpop.f32.mrf.mxu0
  %v440 = vadd.f32 %v371, %v439
  %v441 = vpop.f32.mrf.mxu0
  %442 = vdwg.mxu0
  %v443 = vmax.f32 %v440, 0.0
  %v444 = vsub.f32 %v333, %v443
  %v445 = vmul.f32 %v444, %v444
  %v446 = vld [vmem:[%s10] sm:$0xff]
  %v447 = vld [vmem:[%s10 + $0x8] sm:$0xff]
  %v448 = vld [vmem:[%s10 + $0x10] sm:$0xff]
  %v449 = vld [vmem:[%s10 + $0x18] sm:$0xff]
  %v450 = vld [vmem:[%s10 + $0x20] sm:$0xff]
  %v451 = vld [vmem:[%s10 + $0x28] sm:$0xff]
  %v452 = vld [vmem:[%s10 + $0x30] sm:$0xff]
  %v453 = vld [vmem:[%s10 + $0x38] sm:$0xff]
  %vm454 = vcmask 523264
  %v456 = vsel %vm454, %v445, 0
  %458 = vmatprep.subr.mxu0 0.0
  %459 = vmatpush1.msra.mxu0 0.0
  %460 = vmatprep.subr.mxu0 0.0
  %461 = vmatpush1.msra.mxu0 0.0
  %462 = vmatprep.subr.mxu0 0.0
  %463 = vmatpush1.msra.mxu0 0.0
  %464 = vmatprep.subr.mxu0 0.0
  %465 = vmatpush1.msra.mxu0 0.0
  %466 = vmatprep.subr.mxu0 0.0
  %467 = vmatpush1.msra.mxu0 0.0
  %468 = vmatprep.subr.mxu0 0.0
  %469 = vmatpush1.msra.mxu0 0.0
  %470 = vmatprep.subr.mxu0 0.0
  %471 = vmatpush1.msra.mxu0 0.0
  %472 = vmatprep.subr.mxu0 0.0
  %473 = vmatpush1.msra.mxu0 0.0
  %474 = vmatprep.subr.mxu0 0.0
  %475 = vmatpush1.msra.mxu0 %v453
  %476 = vmatprep.subr.mxu0 0.0
  %477 = vmatpush1.msra.mxu0 %v452
  %478 = vmatprep.subr.mxu0 0.0
  %479 = vmatpush1.msra.mxu0 %v451
  %480 = vmatprep.subr.mxu0 0.0
  %481 = vmatpush1.msra.mxu0 %v450
  %482 = vmatprep.subr.mxu0 0.0
  %483 = vmatpush1.msra.mxu0 %v449
  %484 = vmatprep.subr.mxu0 0.0
  %485 = vmatpush1.msra.mxu0 %v448
  %486 = vmatprep.subr.mxu0 0.0
  %487 = vmatpush1.msra.mxu0 %v447
  %488 = vmatprep.subr.mxu0 0.0
  %489 = vmatpush1.msra.mxu0 %v446
  %490 = vmatprep.subr.mxu0 0.0
  %491 = vmatpush2.msra.mxu0 0.0
  %492 = vmatprep.subr.mxu0 0.0
  %493 = vmatpush2.msra.mxu0 0.0
  %494 = vmatprep.subr.mxu0 0.0
  %495 = vmatpush2.msra.mxu0 0.0
  %496 = vmatprep.subr.mxu0 0.0
  %497 = vmatpush2.msra.mxu0 0.0
  %498 = vmatprep.subr.mxu0 0.0
  %499 = vmatpush2.msra.mxu0 0.0
  %500 = vmatprep.subr.mxu0 0.0
  %501 = vmatpush2.msra.mxu0 0.0
  %502 = vmatprep.subr.mxu0 0.0
  %503 = vmatpush2.msra.mxu0 0.0
  %504 = vmatprep.subr.mxu0 0.0
  %505 = vmatpush2.msra.mxu0 0.0
  %506 = vmatprep.subr.mxu0 0.0
  %507 = vmatpush2.msra.mxu0 0.0
  %508 = vmatprep.subr.mxu0 0.0
  %509 = vmatpush2.msra.mxu0 0.0
  %510 = vmatprep.subr.mxu0 0.0
  %511 = vmatpush2.msra.mxu0 0.0
  %512 = vmatprep.subr.mxu0 0.0
  %513 = vmatpush2.msra.mxu0 0.0
  %514 = vmatprep.subr.mxu0 0.0
  %515 = vmatpush2.msra.mxu0 0.0
  %516 = vmatprep.subr.mxu0 0.0
  %517 = vmatpush2.msra.mxu0 0.0
  %518 = vmatprep.subr.mxu0 0.0
  %519 = vmatpush2.msra.mxu0 0.0
  %520 = vmatprep.subr.mxu0 0.0
  %521 = vmatpush2.msra.mxu0 0.0
  %522 = vmatprep.mubr.f32.mxu0 0.0
  %523 = vmatmul.mubr.f32.gmra.mxu0 %v456
  %v524 = vpop.f32.mrf.mxu0
  %v525 = vadd.f32 1e-14, %v524
  %v526 = vpop.f32.mrf.mxu0
  %527 = vdwg.mxu0
  %v528 = vrsqrt.pop %v525
  %v529 = vmul.f32 %v525, %v528
  %vm530 = vcmp.eq.f32.partialorder %v525, inf
  %v531 = vsel %vm530, %v525, %v529
  %vm532 = vcmp.eq.f32.partialorder %v525, 0.0
  %v533 = vand.u32 %v525, 2147483648
  %v534 = vsel %vm532, %v533, %v531
  %v535 = vmul.f32 %v534, -0.020202707
  %v536 = vmul.f32 %v535, 1.442695
  %v537 = vpow.pop %v536
  %v538 = vsub.f32 1.0, %v537
  %v539 = vsub.f32 0.0, %v538
  %v540 = vmul.f32 %v539, 50.0
  %541 = vst.msk [vmem:[%s11] sm:$0xff] %vm147, %v540
  // Predicated region
  $region46: #{_qnet_forward.1} parent=0 // pred_check
    _
  $region47: #{_qnet_forward.1} parent=0 // pred_check_branch
    %543 = sbr.rel (0) target = $region49
  $region48: #{_qnet_forward.1} parent=0 // pred_region
    _
  $region49: #{_qnet_forward.1} parent=0 // pred_fallthru
    _
  // Predicated region
  $region50: #{_qnet_forward.1} parent=0 // pred_check
    _
  $region51: #{_qnet_forward.1} parent=0 // pred_check_branch
    %545 = sbr.rel (0) target = $region53
  $region52: #{_qnet_forward.1} parent=0 // pred_region
    _
  $region53: #{_qnet_forward.1} parent=0 // pred_fallthru
    _

</llo_original>
